<compile_context>
chip_gen: v5e
topology: v5e:2x2
jax: 0.10.0
libtpu: 0.0.40
codegen_flags: <defaults>
</compile_context>

<pallas_src>
import jax
import jax.numpy as jnp
from jax.experimental import pallas as pl
from jax.experimental.pallas import tpu as pltpu


# --------------------------------------------------------------------------- #
# Kernel
# --------------------------------------------------------------------------- #
def _make_kernel(fuse_qkv):
    """Returns the kernel body. `fuse_qkv` is a static Python flag."""

    def kernel(*refs):
        if fuse_qkv:
            (x_ref, we_ref, be_ref, wqkv_ref, wo_ref, out_ref, mask_ref) = refs
        else:
            (x_ref, we_ref, be_ref, wq_ref, wk_ref, wv_ref, wo_ref,
             out_ref, mask_ref) = refs

        Bb, T, D_in = x_ref.shape
        H = wo_ref.shape[0]

        x = x_ref[...]                                               # (Bb, T, D_in) f32

        # ---- padding mask: frame valid iff any feature != 0 (lane-dense (Bb, T)) ----
        m = (jnp.sum(jnp.abs(x), axis=-1) > 0.0).astype(jnp.float32)

        # ---- embedding: linear projection on the flattened (Bb*T, D_in) slab ----
        xf = x.reshape(Bb * T, D_in).astype(jnp.bfloat16)
        y = jnp.dot(xf, we_ref[...],
                    preferred_element_type=jnp.float32) + be_ref[...]   # (Bb*T, H) f32
        y16 = y.astype(jnp.bfloat16)

        scale = 1.0 / jnp.sqrt(jnp.float32(H))

        # ---- Q/K/V projections ----
        if fuse_qkv:
            # single (H, 3H) MXU matmul; H % 128 == 0 so the column slices are
            # tile-aligned (free).
            qkv = jnp.dot(y16, wqkv_ref[...],
                          preferred_element_type=jnp.float32)           # (Bb*T, 3H)
            q = qkv[:, :H] * scale
            k = qkv[:, H:2 * H]
            v = qkv[:, 2 * H:]
        else:
            # H not lane-aligned: three separate matmuls (avoids relayout slices)
            q = jnp.dot(y16, wq_ref[...], preferred_element_type=jnp.float32) * scale
            k = jnp.dot(y16, wk_ref[...], preferred_element_type=jnp.float32)
            v = jnp.dot(y16, wv_ref[...], preferred_element_type=jnp.float32)

        q = q.reshape(Bb, T, H).astype(jnp.bfloat16)
        k = k.reshape(Bb, T, H).astype(jnp.bfloat16)
        v = v.reshape(Bb, T, H).astype(jnp.bfloat16)

        # ---- masked single-head self-attention (no explicit transpose of k) ----
        s = jnp.einsum('bqd,bkd->bqk', q, k,
                       preferred_element_type=jnp.float32)              # (Bb, T, T)
        s = jnp.where(m[:, None, :] > 0.0, s, jnp.float32(-1e9))        # mask padded keys

        # numerically stable softmax; reciprocal on the EUP
        s_max = jnp.max(s, axis=-1, keepdims=True)
        e = jnp.exp(s - s_max)
        inv = pl.reciprocal(jnp.sum(e, axis=-1, keepdims=True), approx=True)
        p = (e * inv).astype(jnp.bfloat16)                              # (Bb, T, T)

        a = jnp.einsum('bqk,bkd->bqd', p, v,
                       preferred_element_type=jnp.float32)              # (Bb, T, H)

        # ---- output projection + residual (flattened slab again) ----
        o = jnp.dot(a.reshape(Bb * T, H).astype(jnp.bfloat16), wo_ref[...],
                    preferred_element_type=jnp.float32) + y             # (Bb*T, H) f32

        out_ref[...] = o.reshape(Bb, T, H).astype(out_ref.dtype)
        mask_ref[...] = m

    return kernel


# --------------------------------------------------------------------------- #
# Tiling / VMEM budgeting
# --------------------------------------------------------------------------- #
def _tpu_hw():
    """Returns (num_tensorcores_per_device, usable VMEM budget bytes)."""
    try:
        kind = jax.devices()[0].device_kind.lower()
    except Exception:  # pragma: no cover - defensive
        kind = ""
    if "v7" in kind or "tpu7" in kind or "7x" in kind:
        return 2, 40 << 20          # v7x: 64 MiB physical, ~40-48 MiB usable
    if "v4" in kind or "v5p" in kind:
        return 2, 96 << 20          # megacore generations, 128 MiB VMEM
    if "v5" in kind or "v6" in kind:
        return 1, 96 << 20          # v5e / v6e: 128 MiB physical
    return 2, 32 << 20              # unknown: conservative budget, assume 2 cores


def _activation_vmem_bytes(Bb, T, D_in, H):
    """Conservative per-step live VMEM for activations (bytes)."""
    per_row = (2 * 4 * D_in + 2 * 4 * H + 2 * 4   # double-buffered x / out / mask blocks
               + 2 * D_in                         # xf bf16
               + 4 * H + 2 * H                    # residual y f32 + y16 bf16
               + 3 * 4 * H + 3 * 2 * H            # qkv f32 + q/k/v bf16
               + 4 * H + 4 * H                    # attention ctx f32 + o f32
               + 10 * T)                          # s f32 + e f32 + p bf16 scores
    return Bb * T * per_row


def _weight_vmem_bytes(D_in, H):
    """bf16 weights, single-buffered (memory-space VMEM specs) + f32 bias."""
    return 2 * (D_in * H + 4 * H * H) + 4 * H


def _choose_block_b(B, T, D_in, H, vmem_budget, num_cores):
    """Largest Bb dividing B that fits the VMEM budget.

    Bb must be sublane friendly for the (Bb, T) mask block (Bb % 8 == 0 or
    Bb == B).  Prefer blocks that leave >= num_cores grid steps so the batch
    axis can be sharded across TensorCores (v7x / megacore)."""
    fixed = _weight_vmem_bytes(D_in, H) + (2 << 20)   # weights + compiler slack
    cands = [bb for bb in range(1, B + 1)
             if B % bb == 0 and (bb % 8 == 0 or bb == B)]

    def fits(bb):
        return fixed + _activation_vmem_bytes(bb, T, D_in, H) <= vmem_budget

    pref = [bb for bb in cands if fits(bb) and (B // bb) >= num_cores]
    if pref:
        return max(pref)
    fit_any = [bb for bb in cands if fits(bb)]
    if fit_any:
        return max(fit_any)
    return min(cands)   # nothing fits the budget: smallest legal block


# --------------------------------------------------------------------------- #
# Wrapper
# --------------------------------------------------------------------------- #
def ignore_upstream_model(x, params, out_dtype=jnp.float32):
    """x: (B, T, D_in) float32.  Returns (y: (B, T, H), mask: (B, T) f32).

    `out_dtype=jnp.bfloat16` halves writeback bytes (recommended on v5e if the
    downstream consumer tolerates it); default keeps the f32 reference dtype."""
    B, T, D_in = x.shape
    H = params["we"].shape[1]
    fuse_qkv = (H % 128 == 0)

    num_cores, vmem_budget = _tpu_hw()
    Bb = _choose_block_b(B, T, D_in, H, vmem_budget, num_cores)
    grid = (B // Bb,)

    # Pre-cast weights to bf16 once, outside the kernel.
    we = params["we"].astype(jnp.bfloat16)
    be = params["be"].astype(jnp.float32)
    wo = params["wo"].astype(jnp.bfloat16)
    if fuse_qkv:
        wqkv = jnp.concatenate(
            [params["wq"], params["wk"], params["wv"]], axis=1).astype(jnp.bfloat16)
        weight_args = (we, be, wqkv, wo)
    else:
        weight_args = (we, be,
                       params["wq"].astype(jnp.bfloat16),
                       params["wk"].astype(jnp.bfloat16),
                       params["wv"].astype(jnp.bfloat16),
                       wo)

    # Memory-space-only BlockSpecs: weights live in VMEM once for the whole
    # grid (no per-step double-buffering of constant blocks).
    weight_specs = [pl.BlockSpec(memory_space=pltpu.MemorySpace.VMEM)
                    for _ in weight_args]

    # Advisory cost estimate so XLA schedules the wrapper-side casts/concat
    # around (not serialized with) the custom call.
    flops = 2 * B * T * (D_in * H + 4 * H * H + 2 * T * H)
    transcendentals = B * T * T + B * T
    bytes_accessed = (x.size * 4
                      + sum(int(w.size) * (4 if w.dtype == jnp.float32 else 2)
                            for w in weight_args)
                      + B * T * H * jnp.dtype(out_dtype).itemsize
                      + B * T * 4)

    out, mask = pl.pallas_call(
        _make_kernel(fuse_qkv),
        out_shape=(
            jax.ShapeDtypeStruct((B, T, H), out_dtype),
            jax.ShapeDtypeStruct((B, T), jnp.float32),
        ),
        grid_spec=pltpu.PrefetchScalarGridSpec(
            num_scalar_prefetch=0,
            grid=grid,
            in_specs=[pl.BlockSpec((Bb, T, D_in), lambda b: (b, 0, 0))]  # x
                     + weight_specs,
            out_specs=[
                pl.BlockSpec((Bb, T, H), lambda b: (b, 0, 0)),   # encoder output
                pl.BlockSpec((Bb, T), lambda b: (b, 0)),         # lane-dense mask
            ],
        ),
        compiler_params=pltpu.CompilerParams(
            dimension_semantics=("parallel",),
            vmem_limit_bytes=int(vmem_budget),
        ),
        cost_estimate=pl.CostEstimate(
            flops=int(flops),
            transcendentals=int(transcendentals),
            bytes_accessed=int(bytes_accessed),
        ),
    )(x, *weight_args)

    return out, mask


# --------------------------------------------------------------------------- #
# Params / reference / demo
# --------------------------------------------------------------------------- #
def init_params(key, d_in, hidden):
    ks = jax.random.split(key, 6)
    scale_in = 1.0 / jnp.sqrt(jnp.float32(d_in))
    scale_h = 1.0 / jnp.sqrt(jnp.float32(hidden))
    return {
        "we": jax.random.normal(ks[0], (d_in, hidden), jnp.float32) * scale_in,
        "be": jnp.zeros((1, hidden), jnp.float32),
        "wq": jax.random.normal(ks[1], (hidden, hidden), jnp.float32) * scale_h,
        "wk": jax.random.normal(ks[2], (hidden, hidden), jnp.float32) * scale_h,
        "wv": jax.random.normal(ks[3], (hidden, hidden), jnp.float32) * scale_h,
        "wo": jax.random.normal(ks[4], (hidden, hidden), jnp.float32) * scale_h,
    }


def _reference(x, params):
    """Pure-JAX f32 reference of the same forward pass."""
    H = params["we"].shape[1]
    m = (jnp.sum(jnp.abs(x), axis=-1) > 0.0).astype(jnp.float32)
    y = x @ params["we"] + params["be"]
    q = (y @ params["wq"]) / jnp.sqrt(jnp.float32(H))
    k = y @ params["wk"]
    v = y @ params["wv"]
    s = jnp.einsum('bqd,bkd->bqk', q, k)
    s = jnp.where(m[:, None, :] > 0.0, s, -1e9)
    p = jax.nn.softmax(s, axis=-1)
    a = jnp.einsum('bqk,bkd->bqd', p, v)
    return a @ params["wo"] + y, m


if __name__ == "__main__":
    # H = 128 keeps output stores lane-dense and the fused-QKV slices aligned.
    B, T, D_IN, HIDDEN = 2, 8, 32, 128

    key = jax.random.PRNGKey(0)
    k_x, k_p = jax.random.split(key)

    x = jax.random.normal(k_x, (B, T, D_IN), jnp.float32)
    # zero-pad the last two frames of the second sequence so the mask is exercised
    x = x.at[1, T - 2:, :].set(0.0)

    params = init_params(k_p, D_IN, HIDDEN)

    y, mask = ignore_upstream_model(x, params)
    jax.block_until_ready((y, mask))

    assert y.shape == (B, T, HIDDEN)
    assert mask.shape == (B, T)
    assert bool(mask[0].all()) and float(mask[1, -1]) == 0.0

    # Loose tolerance: bf16 MXU matmuls + approximate (EUP) softmax reciprocal.
    y_ref, m_ref = _reference(x, params)
    assert bool(jnp.allclose(mask, m_ref))
    assert bool(jnp.allclose(y, y_ref, atol=1e-1, rtol=5e-2))

    print("KERNEL_OK")
</pallas_src>

<mosaic_0001>
module attributes {stable_mosaic.version = 11 : i64} {
  func.func @kernel(%arg0: i32, %arg1: memref<2x8x32xf32, #tpu.memory_space<vmem>>, %arg2: memref<32x128xbf16, #tpu.memory_space<vmem>>, %arg3: memref<1x128xf32, #tpu.memory_space<vmem>>, %arg4: memref<128x384xbf16, #tpu.memory_space<vmem>>, %arg5: memref<128x128xbf16, #tpu.memory_space<vmem>>, %arg6: memref<2x8x128xf32, #tpu.memory_space<vmem>>, %arg7: memref<2x8xf32, #tpu.memory_space<vmem>>) attributes {dimension_semantics = [#tpu.dimension_semantics<parallel>], iteration_bounds = array<i64: 1>, scalar_prefetch = 0 : i64, scratch_operands = 0 : i64, tpu.core_type = #tpu.core_type<tc>, window_params = [{transform_indices = @transform_0, window_bounds = array<i64: 2, 8, 32>}, {pipeline_mode = #tpu.pipeline_mode<synchronous>, transform_indices = @transform_1, window_bounds = array<i64: 32, 128>}, {pipeline_mode = #tpu.pipeline_mode<synchronous>, transform_indices = @transform_2, window_bounds = array<i64: 1, 128>}, {pipeline_mode = #tpu.pipeline_mode<synchronous>, transform_indices = @transform_3, window_bounds = array<i64: 128, 384>}, {pipeline_mode = #tpu.pipeline_mode<synchronous>, transform_indices = @transform_4, window_bounds = array<i64: 128, 128>}, {transform_indices = @transform_5, window_bounds = array<i64: 2, 8, 128>}, {transform_indices = @transform_6, window_bounds = array<i64: 2, 8>}]} {
    %c0 = arith.constant 0 : index
    %c0_0 = arith.constant 0 : index
    %c0_1 = arith.constant 0 : index
    %0 = vector.load %arg1[%c0, %c0_0, %c0_1] : memref<2x8x32xf32, #tpu.memory_space<vmem>>, vector<2x8x32xf32>
    %1 = math.absf %0 : vector<2x8x32xf32>
    %cst = arith.constant dense<0.000000e+00> : vector<2x8xf32>
    %2 = vector.multi_reduction <add>, %1, %cst [2] : vector<2x8x32xf32> to vector<2x8xf32>
    %cst_2 = arith.constant 0.000000e+00 : f32
    %3 = vector.broadcast %cst_2 : f32 to vector<2x8xf32>
    %4 = arith.cmpf ogt, %2, %3 : vector<2x8xf32>
    %5 = arith.extui %4 : vector<2x8xi1> to vector<2x8xi32>
    %6 = arith.sitofp %5 : vector<2x8xi32> to vector<2x8xf32>
    %7 = vector.shape_cast %0 : vector<2x8x32xf32> to vector<16x32xf32>
    %8 = arith.truncf %7 : vector<16x32xf32> to vector<16x32xbf16>
    %c0_3 = arith.constant 0 : index
    %c0_4 = arith.constant 0 : index
    %9 = vector.load %arg2[%c0_3, %c0_4] : memref<32x128xbf16, #tpu.memory_space<vmem>>, vector<32x128xbf16>
    %cst_5 = arith.constant dense<0.000000e+00> : vector<16x128xf32>
    %10 = tpu.matmul %8, %9, %cst_5 {dimension_numbers = #tpu.dot_dimension_numbers<[1], [0], [0], [1], [0, 0, 1, 1], [], []>} : vector<16x32xbf16>, vector<32x128xbf16>, vector<16x128xf32> -> vector<16x128xf32>
    %c0_6 = arith.constant 0 : index
    %c0_7 = arith.constant 0 : index
    %11 = vector.load %arg3[%c0_6, %c0_7] : memref<1x128xf32, #tpu.memory_space<vmem>>, vector<1x128xf32>
    %12 = vector.broadcast %11 : vector<1x128xf32> to vector<16x128xf32>
    %13 = arith.addf %10, %12 : vector<16x128xf32>
    %14 = arith.truncf %13 : vector<16x128xf32> to vector<16x128xbf16>
    %cst_8 = arith.constant 1.280000e+02 : f32
    %15 = math.sqrt %cst_8 : f32
    %cst_9 = arith.constant 1.000000e+00 : f32
    %16 = arith.divf %cst_9, %15 : f32
    %c0_10 = arith.constant 0 : index
    %c0_11 = arith.constant 0 : index
    %17 = vector.load %arg4[%c0_10, %c0_11] : memref<128x384xbf16, #tpu.memory_space<vmem>>, vector<128x384xbf16>
    %cst_12 = arith.constant dense<0.000000e+00> : vector<16x384xf32>
    %18 = tpu.matmul %14, %17, %cst_12 {dimension_numbers = #tpu.dot_dimension_numbers<[1], [0], [0], [1], [0, 0, 1, 1], [], []>} : vector<16x128xbf16>, vector<128x384xbf16>, vector<16x384xf32> -> vector<16x384xf32>
    %19 = vector.extract_strided_slice %18 {offsets = [0, 0], sizes = [16, 128], strides = [1, 1]} : vector<16x384xf32> to vector<16x128xf32>
    %20 = vector.broadcast %16 : f32 to vector<16x128xf32>
    %21 = arith.mulf %19, %20 : vector<16x128xf32>
    %22 = vector.extract_strided_slice %18 {offsets = [0, 128], sizes = [16, 128], strides = [1, 1]} : vector<16x384xf32> to vector<16x128xf32>
    %23 = vector.extract_strided_slice %18 {offsets = [0, 256], sizes = [16, 128], strides = [1, 1]} : vector<16x384xf32> to vector<16x128xf32>
    %24 = vector.shape_cast %21 : vector<16x128xf32> to vector<2x8x128xf32>
    %25 = arith.truncf %24 : vector<2x8x128xf32> to vector<2x8x128xbf16>
    %26 = vector.shape_cast %22 : vector<16x128xf32> to vector<2x8x128xf32>
    %27 = arith.truncf %26 : vector<2x8x128xf32> to vector<2x8x128xbf16>
    %28 = vector.shape_cast %23 : vector<16x128xf32> to vector<2x8x128xf32>
    %29 = arith.truncf %28 : vector<2x8x128xf32> to vector<2x8x128xbf16>
    "tpu.trace_start"() <{level = 10 : i32, message = "bqd,bkd->bqk"}> : () -> ()
    %cst_13 = arith.constant dense<0.000000e+00> : vector<2x8x8xf32>
    %30 = tpu.matmul %25, %27, %cst_13 {dimension_numbers = #tpu.dot_dimension_numbers<[2], [2], [1], [1], [0, 0, 0, 1, 1, 1], [0], [0]>} : vector<2x8x128xbf16>, vector<2x8x128xbf16>, vector<2x8x8xf32> -> vector<2x8x8xf32>
    "tpu.trace_stop"() : () -> ()
    %31 = vector.shape_cast %6 : vector<2x8xf32> to vector<2x1x8xf32>
    %cst_14 = arith.constant 0.000000e+00 : f32
    %32 = vector.broadcast %cst_14 : f32 to vector<2x1x8xf32>
    %33 = arith.cmpf ogt, %31, %32 : vector<2x1x8xf32>
    %cst_15 = arith.constant -1.000000e+09 : f32
    %34 = vector.shape_cast %33 : vector<2x1x8xi1> to vector<2x1x8xi1>
    %35 = vector.broadcast %34 : vector<2x1x8xi1> to vector<2x8x8xi1>
    %36 = vector.broadcast %cst_15 : f32 to vector<2x8x8xf32>
    %37 = arith.select %35, %30, %36 : vector<2x8x8xi1>, vector<2x8x8xf32>
    %cst_16 = arith.constant dense<0xFF800000> : vector<2x8xf32>
    %38 = vector.multi_reduction <maximumf>, %37, %cst_16 [2] : vector<2x8x8xf32> to vector<2x8xf32>
    %39 = vector.shape_cast %38 : vector<2x8xf32> to vector<2x8x1xf32>
    %40 = vector.broadcast %39 : vector<2x8x1xf32> to vector<2x8x8xf32>
    %41 = arith.subf %37, %40 : vector<2x8x8xf32>
    %42 = math.exp %41 : vector<2x8x8xf32>
    %cst_17 = arith.constant dense<0.000000e+00> : vector<2x8xf32>
    %43 = vector.multi_reduction <add>, %42, %cst_17 [2] : vector<2x8x8xf32> to vector<2x8xf32>
    %44 = vector.shape_cast %43 : vector<2x8xf32> to vector<2x8x1xf32>
    %45 = tpu.reciprocal %44 {approx = true} : vector<2x8x1xf32> -> vector<2x8x1xf32>
    %46 = vector.broadcast %45 : vector<2x8x1xf32> to vector<2x8x8xf32>
    %47 = arith.mulf %42, %46 : vector<2x8x8xf32>
    %48 = arith.truncf %47 : vector<2x8x8xf32> to vector<2x8x8xbf16>
    "tpu.trace_start"() <{level = 10 : i32, message = "bqk,bkd->bqd"}> : () -> ()
    %cst_18 = arith.constant dense<0.000000e+00> : vector<2x8x128xf32>
    %49 = tpu.matmul %48, %29, %cst_18 {dimension_numbers = #tpu.dot_dimension_numbers<[2], [1], [1], [2], [0, 0, 0, 1, 1, 2], [0], [0]>} : vector<2x8x8xbf16>, vector<2x8x128xbf16>, vector<2x8x128xf32> -> vector<2x8x128xf32>
    "tpu.trace_stop"() : () -> ()
    %50 = vector.shape_cast %49 : vector<2x8x128xf32> to vector<16x128xf32>
    %51 = arith.truncf %50 : vector<16x128xf32> to vector<16x128xbf16>
    %c0_19 = arith.constant 0 : index
    %c0_20 = arith.constant 0 : index
    %52 = vector.load %arg5[%c0_19, %c0_20] : memref<128x128xbf16, #tpu.memory_space<vmem>>, vector<128x128xbf16>
    %cst_21 = arith.constant dense<0.000000e+00> : vector<16x128xf32>
    %53 = tpu.matmul %51, %52, %cst_21 {dimension_numbers = #tpu.dot_dimension_numbers<[1], [0], [0], [1], [0, 0, 1, 1], [], []>} : vector<16x128xbf16>, vector<128x128xbf16>, vector<16x128xf32> -> vector<16x128xf32>
    %54 = arith.addf %53, %13 : vector<16x128xf32>
    %55 = vector.shape_cast %54 : vector<16x128xf32> to vector<2x8x128xf32>
    %c0_22 = arith.constant 0 : index
    %c0_23 = arith.constant 0 : index
    %c0_24 = arith.constant 0 : index
    %56 = vector.load %arg6[%c0_22, %c0_23, %c0_24] : memref<2x8x128xf32, #tpu.memory_space<vmem>>, vector<2x8x128xf32>
    tpu.vector_store %arg6[%c0_22, %c0_23, %c0_24], %55 {strides = array<i32>} : memref<2x8x128xf32, #tpu.memory_space<vmem>>, vector<2x8x128xf32>,
    %c0_25 = arith.constant 0 : index
    %c0_26 = arith.constant 0 : index
    %57 = vector.load %arg7[%c0_25, %c0_26] : memref<2x8xf32, #tpu.memory_space<vmem>>, vector<2x8xf32>
    tpu.vector_store %arg7[%c0_25, %c0_26], %6 {strides = array<i32>} : memref<2x8xf32, #tpu.memory_space<vmem>>, vector<2x8xf32>,
    return
  }
  func.func @transform_0(%arg0: i32) -> (i32, i32, i32) {
    %c0_i32 = arith.constant 0 : i32
    %c0_i32_0 = arith.constant 0 : i32
    %c0_i32_1 = arith.constant 0 : i32
    return %arg0, %c0_i32, %c0_i32_0 : i32, i32, i32
  }
  func.func @transform_1(%arg0: i32) -> (i32, i32) {
    %c0_i32 = arith.constant 0 : i32
    %c0_i32_0 = arith.constant 0 : i32
    %c0_i32_1 = arith.constant 0 : i32
    return %c0_i32, %c0_i32_0 : i32, i32
  }
  func.func @transform_2(%arg0: i32) -> (i32, i32) {
    %c0_i32 = arith.constant 0 : i32
    %c0_i32_0 = arith.constant 0 : i32
    %c0_i32_1 = arith.constant 0 : i32
    return %c0_i32, %c0_i32_0 : i32, i32
  }
  func.func @transform_3(%arg0: i32) -> (i32, i32) {
    %c0_i32 = arith.constant 0 : i32
    %c0_i32_0 = arith.constant 0 : i32
    %c0_i32_1 = arith.constant 0 : i32
    return %c0_i32, %c0_i32_0 : i32, i32
  }
  func.func @transform_4(%arg0: i32) -> (i32, i32) {
    %c0_i32 = arith.constant 0 : i32
    %c0_i32_0 = arith.constant 0 : i32
    %c0_i32_1 = arith.constant 0 : i32
    return %c0_i32, %c0_i32_0 : i32, i32
  }
  func.func @transform_5(%arg0: i32) -> (i32, i32, i32) {
    %c0_i32 = arith.constant 0 : i32
    %c0_i32_0 = arith.constant 0 : i32
    %c0_i32_1 = arith.constant 0 : i32
    return %arg0, %c0_i32, %c0_i32_0 : i32, i32, i32
  }
  func.func @transform_6(%arg0: i32) -> (i32, i32) {
    %c0_i32 = arith.constant 0 : i32
    %c0_i32_0 = arith.constant 0 : i32
    return %arg0, %c0_i32 : i32, i32
  }
}

</mosaic_0001>

<llo_original>
// kernel: tpu_custom_call.1
$region0: #{tpu_custom_call.1}
  #allocation0 [shape = 'u32[]', space=smem, size = 0x4, offset = 0x4, fixed_abs, tag = 'smem constant byte address 0x4 - core index']
  #allocation1 [shape = 'u32[72,128]{1,0:T(1,128)}', space=vmem, size = 0x9000, scoped, tag = 'internal scratch']
  %s0 = inlined_call_operand.hbm [shape: f32[2,8,32], index: 0, kind: input, shape index: {}]
  %s1 = inlined_call_operand.hbm [shape: bf16[32,128], index: 1, kind: input, shape index: {}]
  %s2 = inlined_call_operand.vmem [shape: f32[1,128], index: 2, kind: input, shape index: {}]
  %s3 = inlined_call_operand.hbm [shape: bf16[128,384], index: 3, kind: input, shape index: {}]
  %s4 = inlined_call_operand.hbm [shape: bf16[128,128], index: 4, kind: input, shape index: {}]
  %s5 = inlined_call_operand.hbm [shape: f32[2,8,128], index: 5, kind: output, shape index: {0}]
  %s6 = inlined_call_operand.hbm [shape: f32[2,8], index: 6, kind: output, shape index: {1}]
  %7 = xla_tuple %s5, %s6
  %s8 = sld [smem:[#allocation0]]
  $region54: #{tpu_custom_call.1} parent=0
    _
  %s10 = ssub.s32 1, %s8
  %s11 = scalar_select 0, %s10, %s8
  $region1: #{tpu_custom_call.1} parent=0
    #allocation2 [shape = 'u8[8192]{0}', space=vmem, size = 0x2000, scoped, tag = 'input window, operand 0, single buffered']
    #allocation3 [shape = 's32[1]{0}', space=sflag, size = 0x4, scoped, tag = 'scoped memory for tpu_custom_call.1']
    #allocation4 [shape = 's32[1]{0}', space=sflag, size = 0x4, scoped, tag = 'scoped memory for tpu_custom_call.1']
    #allocation5 [shape = 'u8[8192]{0}', space=vmem, size = 0x2000, scoped, tag = 'input window, operand 1, single buffered']
    #allocation6 [shape = 's32[1]{0}', space=sflag, size = 0x4, scoped, tag = 'scoped memory for tpu_custom_call.1']
    #allocation7 [shape = 'u8[98304]{0}', space=vmem, size = 0x18000, scoped, tag = 'input window, operand 3, single buffered']
    #allocation8 [shape = 'u8[32768]{0}', space=vmem, size = 0x8000, scoped, tag = 'input window, operand 4, single buffered']
    #allocation9 [shape = 's32[1]{0}', space=sflag, size = 0x4, scoped, tag = 'scoped memory for tpu_custom_call.1']
    #allocation10 [shape = 'u8[8192]{0}', space=vmem, size = 0x2000, scoped, tag = 'output window, operand 0, single buffered']
    #allocation11 [shape = 'u8[1024]{0}', space=vmem, size = 0x400, scoped, tag = 'output window, operand 1, single buffered']
    #allocation12 [shape = 's32[1]{0}', space=sflag, size = 0x4, scoped, tag = 'scoped memory for tpu_custom_call.1']
    %12 = vsyncpa [#allocation3], 0
    %13 = vsyncpa [#allocation6], 0
    %14 = vsyncpa [#allocation9], 0
    %15 = vsyncpa [#allocation4], 0
    %16 = vsyncpa [#allocation12], 0
    // Predicated region
    $region2: #{tpu_custom_call.1} parent=1 // pred_check
      _
    $region3: #{tpu_custom_call.1} parent=1 // pred_check_branch
      %18 = sbr.rel (0) target = $region5
    $region4: #{tpu_custom_call.1} parent=1 // pred_region
      %20 = vsyncadd [#allocation3], 0
      %s21 = sshll.u32 %s0, 4
      %s22 = int_to_ptr.hbm [resolvable:$true] %s21
      %s23 = sshll.u32 [#allocation2], 4
      %s24 = int_to_ptr.vmem [resolvable:$true] %s23
      %29 = dma.hbm_to_vmem [thread:$0]  %s22, 256, %s24, [#allocation3], 128, 128, 8
    $region5: #{tpu_custom_call.1} parent=1 // pred_fallthru
      _
    // Predicated region
    $region6: #{tpu_custom_call.1} parent=1 // pred_check
      _
    $region7: #{tpu_custom_call.1} parent=1 // pred_check_branch
      %31 = sbr.rel (0) target = $region9
    $region8: #{tpu_custom_call.1} parent=1 // pred_region
      %33 = vsyncadd [#allocation6], 0
      %s34 = sshll.u32 %s1, 4
      %s35 = int_to_ptr.hbm [resolvable:$true] %s34
      %s36 = sshll.u32 [#allocation5], 4
      %s37 = int_to_ptr.vmem [resolvable:$true] %s36
      %42 = dma.hbm_to_vmem [thread:$0]  %s35, 256, %s37, [#allocation6], 64, 64, 4
    $region9: #{tpu_custom_call.1} parent=1 // pred_fallthru
      _
    // Predicated region
    $region10: #{tpu_custom_call.1} parent=1 // pred_check
      _
    $region11: #{tpu_custom_call.1} parent=1 // pred_check_branch
      %44 = sbr.rel (0) target = $region13
    $region12: #{tpu_custom_call.1} parent=1 // pred_region
      _
    $region13: #{tpu_custom_call.1} parent=1 // pred_fallthru
      _
    // Predicated region
    $region14: #{tpu_custom_call.1} parent=1 // pred_check
      _
    $region15: #{tpu_custom_call.1} parent=1 // pred_check_branch
      %46 = sbr.rel (0) target = $region17
    $region16: #{tpu_custom_call.1} parent=1 // pred_region
      %48 = vsyncadd [#allocation6], 0
      %s49 = sshll.u32 %s3, 4
      %s50 = int_to_ptr.hbm [resolvable:$true] %s49
      %s51 = sshll.u32 [#allocation7], 4
      %s52 = int_to_ptr.vmem [resolvable:$true] %s51
      %57 = dma.hbm_to_vmem [thread:$0]  %s50, 3072, %s52, [#allocation6], 192, 192, 12
    $region17: #{tpu_custom_call.1} parent=1 // pred_fallthru
      _
    // Predicated region
    $region18: #{tpu_custom_call.1} parent=1 // pred_check
      _
    $region19: #{tpu_custom_call.1} parent=1 // pred_check_branch
      %59 = sbr.rel (0) target = $region21
    $region20: #{tpu_custom_call.1} parent=1 // pred_region
      %61 = vsyncadd [#allocation9], 0
      %s62 = sshll.u32 %s4, 4
      %s63 = int_to_ptr.hbm [resolvable:$true] %s62
      %s64 = sshll.u32 [#allocation8], 4
      %s65 = int_to_ptr.vmem [resolvable:$true] %s64
      %70 = dma.hbm_to_vmem [thread:$0]  %s63, 1024, %s65, [#allocation9], 64, 64, 4
    $region21: #{tpu_custom_call.1} parent=1 // pred_fallthru
      _
    // Predicated region
    $region22: #{tpu_custom_call.1} parent=1 // pred_check
      _
    $region23: #{tpu_custom_call.1} parent=1 // pred_check_branch
      %72 = sbr.rel (0) target = $region25
    $region24: #{tpu_custom_call.1} parent=1 // pred_region
      %74 = dma.done [#allocation3], 256
    $region25: #{tpu_custom_call.1} parent=1 // pred_fallthru
      _
    // Predicated region
    $region26: #{tpu_custom_call.1} parent=1 // pred_check
      _
    $region27: #{tpu_custom_call.1} parent=1 // pred_check_branch
      %76 = sbr.rel (0) target = $region29
    $region28: #{tpu_custom_call.1} parent=1 // pred_region
      %78 = dma.done [#allocation6], 256
    $region29: #{tpu_custom_call.1} parent=1 // pred_fallthru
      _
    // Predicated region
    $region30: #{tpu_custom_call.1} parent=1 // pred_check
      _
    $region31: #{tpu_custom_call.1} parent=1 // pred_check_branch
      %80 = sbr.rel (0) target = $region33
    $region32: #{tpu_custom_call.1} parent=1 // pred_region
      %82 = dma.done [#allocation6], 3072
    $region33: #{tpu_custom_call.1} parent=1 // pred_fallthru
      _
    // Predicated region
    $region34: #{tpu_custom_call.1} parent=1 // pred_check
      _
    $region35: #{tpu_custom_call.1} parent=1 // pred_check_branch
      %84 = sbr.rel (0) target = $region37
    $region36: #{tpu_custom_call.1} parent=1 // pred_region
      %86 = dma.done [#allocation9], 1024
    $region37: #{tpu_custom_call.1} parent=1 // pred_fallthru
      _
    %v88 = vld [vmem:[#allocation2] sm:$0xff]
    %v89 = vld [vmem:[#allocation2 + $0x8] sm:$0xff]
    %v90 = vand.u32 2147483647, %v88
    %v91 = vand.u32 2147483647, %v89
    %vm92 = vcmask 261120
    %v93 = vsel %vm92, %v90, 0.0
    %94 = vadd.xlane.f32.xlu0 %v93
    %v95 = vpop.xlane.xlu0 %94
    %v96 = vsel %vm92, %v91, 0.0
    %97 = vadd.xlane.f32.xlu0 %v96
    %v98 = vpop.xlane.xlu0 %97
    %vm99 = vcmp.gt.f32.partialorder %v95, 0.0
    %vm100 = vcmp.gt.f32.partialorder %v98, 0.0
    %v101 = vsel %vm99, 1, 0
    %v102 = vsel %vm100, 1, 0
    %v103 = vcvt.s32.f32 %v101
    %v104 = vcvt.s32.f32 %v102
    %v105 = vpack.c.bf16 %v89, %v88
    %v106 = vld [vmem:[#allocation5] sm:$0xf]
    %v107 = vld [vmem:[#allocation5 + $0x4] sm:$0xf]
    %v108 = vld [vmem:[#allocation5 + $0x8] sm:$0xf]
    %v109 = vld [vmem:[#allocation5 + $0xc] sm:$0xf]
    %v110 = vld [vmem:[%s2] sm:$0x1]
    %v112 = vperm.slane %v110, 0
    %v118 = vunpack.c.l.b16 %v106
    %v119 = vunpack.c.l.b16 %v107
    %v120 = vunpack.c.l.b16 %v108
    %v121 = vunpack.c.l.b16 %v109
    %v122 = vpack.c.b16 %v119, %v118
    %v123 = vpack.c.b16 %v121, %v120
    %v127 = vsel %vm92, %v105, 0
    %129 = vmatpush.bf16.msra.mxu0 0
    %130 = vmatpush.bf16.msra.mxu0 0
    %131 = vmatpush.bf16.msra.mxu0 0
    %132 = vmatpush.bf16.msra.mxu0 0
    %133 = vmatpush.bf16.msra.mxu0 0
    %134 = vmatpush.bf16.msra.mxu0 0
    %135 = vmatpush.bf16.msra.mxu0 %v123
    %136 = vmatpush.bf16.msra.mxu0 %v122
    %137 = vmatmul.bf16.gmra.mxu0 %v127
    %v138 = vpop.f32.mrf.mxu0
    %v139 = vadd.f32 %v112, %v138
    %v140 = vpop.f32.mrf.mxu0
    %v141 = vadd.f32 %v112, %v140
    %142 = vdwg.mxu0
    %v143 = vpack.c.bf16 %v141, %v139
    %v144 = vld [vmem:[#allocation7] sm:$0xff]
    %v145 = vld [vmem:[#allocation7 + $0x8] sm:$0xf]
    %v146 = vld [vmem:[#allocation7 + $0xc] sm:$0xff]
    %v147 = vld [vmem:[#allocation7 + $0x14] sm:$0xf]
    %v148 = vld [vmem:[#allocation7 + $0x18] sm:$0xff]
    %v149 = vld [vmem:[#allocation7 + $0x20] sm:$0xf]
    %v150 = vld [vmem:[#allocation7 + $0x24] sm:$0xff]
    %v151 = vld [vmem:[#allocation7 + $0x2c] sm:$0xf]
    %v152 = vld [vmem:[#allocation7 + $0x30] sm:$0xff]
    %v153 = vld [vmem:[#allocation7 + $0x38] sm:$0xf]
    %v154 = vld [vmem:[#allocation7 + $0x3c] sm:$0xff]
    %v155 = vld [vmem:[#allocation7 + $0x44] sm:$0xf]
    %v156 = vld [vmem:[#allocation7 + $0x48] sm:$0xff]
    %v157 = vld [vmem:[#allocation7 + $0x50] sm:$0xf]
    %v158 = vld [vmem:[#allocation7 + $0x54] sm:$0xff]
    %v159 = vld [vmem:[#allocation7 + $0x5c] sm:$0xf]
    %v160 = vld [vmem:[#allocation7 + $0x60] sm:$0xff]
    %v161 = vld [vmem:[#allocation7 + $0x68] sm:$0xf]
    %v162 = vld [vmem:[#allocation7 + $0x6c] sm:$0xff]
    %v163 = vld [vmem:[#allocation7 + $0x74] sm:$0xf]
    %v164 = vld [vmem:[#allocation7 + $0x78] sm:$0xff]
    %v165 = vld [vmem:[#allocation7 + $0x80] sm:$0xf]
    %v166 = vld [vmem:[#allocation7 + $0x84] sm:$0xff]
    %v167 = vld [vmem:[#allocation7 + $0x8c] sm:$0xf]
    %v168 = vld [vmem:[#allocation7 + $0x90] sm:$0xff]
    %v169 = vld [vmem:[#allocation7 + $0x98] sm:$0xf]
    %v170 = vld [vmem:[#allocation7 + $0x9c] sm:$0xff]
    %v171 = vld [vmem:[#allocation7 + $0xa4] sm:$0xf]
    %v172 = vld [vmem:[#allocation7 + $0xa8] sm:$0xff]
    %v173 = vld [vmem:[#allocation7 + $0xb0] sm:$0xf]
    %v174 = vld [vmem:[#allocation7 + $0xb4] sm:$0xff]
    %v175 = vld [vmem:[#allocation7 + $0xbc] sm:$0xf]
    %v208 = vunpack.c.l.b16 %v144
    %v209 = vunpack.c.h.b16 %v144
    %v210 = vunpack.c.l.b16 %v145
    %v211 = vunpack.c.l.b16 %v146
    %v212 = vunpack.c.h.b16 %v146
    %v213 = vunpack.c.l.b16 %v147
    %v214 = vunpack.c.l.b16 %v148
    %v215 = vunpack.c.h.b16 %v148
    %v216 = vunpack.c.l.b16 %v149
    %v217 = vunpack.c.l.b16 %v150
    %v218 = vunpack.c.h.b16 %v150
    %v219 = vunpack.c.l.b16 %v151
    %v220 = vunpack.c.l.b16 %v152
    %v221 = vunpack.c.h.b16 %v152
    %v222 = vunpack.c.l.b16 %v153
    %v223 = vunpack.c.l.b16 %v154
    %v224 = vunpack.c.h.b16 %v154
    %v225 = vunpack.c.l.b16 %v155
    %v226 = vunpack.c.l.b16 %v156
    %v227 = vunpack.c.h.b16 %v156
    %v228 = vunpack.c.l.b16 %v157
    %v229 = vunpack.c.l.b16 %v158
    %v230 = vunpack.c.h.b16 %v158
    %v231 = vunpack.c.l.b16 %v159
    %v232 = vunpack.c.l.b16 %v160
    %v233 = vunpack.c.h.b16 %v160
    %v234 = vunpack.c.l.b16 %v161
    %v235 = vunpack.c.l.b16 %v162
    %v236 = vunpack.c.h.b16 %v162
    %v237 = vunpack.c.l.b16 %v163
    %v238 = vunpack.c.l.b16 %v164
    %v239 = vunpack.c.h.b16 %v164
    %v240 = vunpack.c.l.b16 %v165
    %v241 = vunpack.c.l.b16 %v166
    %v242 = vunpack.c.h.b16 %v166
    %v243 = vunpack.c.l.b16 %v167
    %v244 = vunpack.c.l.b16 %v168
    %v245 = vunpack.c.h.b16 %v168
    %v246 = vunpack.c.l.b16 %v169
    %v247 = vunpack.c.l.b16 %v170
    %v248 = vunpack.c.h.b16 %v170
    %v249 = vunpack.c.l.b16 %v171
    %v250 = vunpack.c.l.b16 %v172
    %v251 = vunpack.c.h.b16 %v172
    %v252 = vunpack.c.l.b16 %v173
    %v253 = vunpack.c.l.b16 %v174
    %v254 = vunpack.c.h.b16 %v174
    %v255 = vunpack.c.l.b16 %v175
    %v256 = vpack.c.b16 %v211, %v208
    %v257 = vpack.c.b16 %v212, %v209
    %v258 = vpack.c.b16 %v213, %v210
    %v259 = vpack.c.b16 %v217, %v214
    %v260 = vpack.c.b16 %v218, %v215
    %v261 = vpack.c.b16 %v219, %v216
    %v262 = vpack.c.b16 %v223, %v220
    %v263 = vpack.c.b16 %v224, %v221
    %v264 = vpack.c.b16 %v225, %v222
    %v265 = vpack.c.b16 %v229, %v226
    %v266 = vpack.c.b16 %v230, %v227
    %v267 = vpack.c.b16 %v231, %v228
    %v268 = vpack.c.b16 %v235, %v232
    %v269 = vpack.c.b16 %v236, %v233
    %v270 = vpack.c.b16 %v237, %v234
    %v271 = vpack.c.b16 %v241, %v238
    %v272 = vpack.c.b16 %v242, %v239
    %v273 = vpack.c.b16 %v243, %v240
    %v274 = vpack.c.b16 %v247, %v244
    %v275 = vpack.c.b16 %v248, %v245
    %v276 = vpack.c.b16 %v249, %v246
    %v277 = vpack.c.b16 %v253, %v250
    %v278 = vpack.c.b16 %v254, %v251
    %v279 = vpack.c.b16 %v255, %v252
    %304 = vmatpush.bf16.msra.mxu0 %v277
    %305 = vmatpush.bf16.msra.mxu0 %v274
    %306 = vmatpush.bf16.msra.mxu0 %v271
    %307 = vmatpush.bf16.msra.mxu0 %v268
    %308 = vmatpush.bf16.msra.mxu0 %v265
    %309 = vmatpush.bf16.msra.mxu0 %v262
    %310 = vmatpush.bf16.msra.mxu0 %v259
    %311 = vmatpush.bf16.msra.mxu0 %v256
    %312 = vmatmul.bf16.gmra.mxu0 %v143
    %v313 = vpop.f32.mrf.mxu0
    %v314 = vadd.f32 0.0, %v313
    %v315 = vpop.f32.mrf.mxu0
    %v316 = vadd.f32 0.0, %v315
    %317 = vdwg.mxu0
    %318 = vmatpush.bf16.msra.mxu0 %v278
    %319 = vmatpush.bf16.msra.mxu0 %v275
    %320 = vmatpush.bf16.msra.mxu0 %v272
    %321 = vmatpush.bf16.msra.mxu0 %v269
    %322 = vmatpush.bf16.msra.mxu0 %v266
    %323 = vmatpush.bf16.msra.mxu0 %v263
    %324 = vmatpush.bf16.msra.mxu0 %v260
    %325 = vmatpush.bf16.msra.mxu0 %v257
    %326 = vmatmul.bf16.gmra.mxu0 %v143
    %v327 = vpop.f32.mrf.mxu0
    %v328 = vadd.f32 0.0, %v327
    %v329 = vpop.f32.mrf.mxu0
    %v330 = vadd.f32 0.0, %v329
    %331 = vdwg.mxu0
    %332 = vmatpush.bf16.msra.mxu0 %v279
    %333 = vmatpush.bf16.msra.mxu0 %v276
    %334 = vmatpush.bf16.msra.mxu0 %v273
    %335 = vmatpush.bf16.msra.mxu0 %v270
    %336 = vmatpush.bf16.msra.mxu0 %v267
    %337 = vmatpush.bf16.msra.mxu0 %v264
    %338 = vmatpush.bf16.msra.mxu0 %v261
    %339 = vmatpush.bf16.msra.mxu0 %v258
    %340 = vmatmul.bf16.gmra.mxu0 %v143
    %v341 = vpop.f32.mrf.mxu0
    %v342 = vadd.f32 0.0, %v341
    %v343 = vpop.f32.mrf.mxu0
    %v344 = vadd.f32 0.0, %v343
    %345 = vdwg.mxu0
    %v346 = vmul.f32 %v314, 0.088388346
    %v347 = vmul.f32 %v316, 0.088388346
    %v348 = vpack.c.bf16 %v346, %v346
    %v349 = vpack.c.bf16 %v347, %v347
    %v350 = vpack.c.bf16 %v328, %v328
    %v351 = vpack.c.bf16 %v330, %v330
    %v352 = vpack.c.bf16 %v342, %v342
    %v353 = vpack.c.bf16 %v344, %v344
    %354 = vmatpush.bf16.xpose.msra.mxu0 0
    %355 = vmatpush.bf16.xpose.msra.mxu0 0
    %356 = vmatpush.bf16.xpose.msra.mxu0 0
    %357 = vmatpush.bf16.xpose.msra.mxu0 0
    %358 = vmatpush.bf16.xpose.msra.mxu0 0
    %359 = vmatpush.bf16.xpose.msra.mxu0 0
    %360 = vmatpush.bf16.xpose.msra.mxu0 0
    %361 = vmatpush.bf16.xpose.msra.mxu0 %v350
    %362 = vmatmul.bf16.gmra.mxu0 %v348
    %v363 = vpop.f32.mrf.mxu0
    %v364 = vadd.f32 0.0, %v363
    %v365 = vpop.f32.mrf.mxu0
    %366 = vdwg.mxu0
    %367 = vmatpush.bf16.xpose.msra.mxu0 0
    %368 = vmatpush.bf16.xpose.msra.mxu0 0
    %369 = vmatpush.bf16.xpose.msra.mxu0 0
    %370 = vmatpush.bf16.xpose.msra.mxu0 0
    %371 = vmatpush.bf16.xpose.msra.mxu0 0
    %372 = vmatpush.bf16.xpose.msra.mxu0 0
    %373 = vmatpush.bf16.xpose.msra.mxu0 0
    %374 = vmatpush.bf16.xpose.msra.mxu0 %v351
    %375 = vmatmul.bf16.gmra.mxu0 %v349
    %v376 = vpop.f32.mrf.mxu0
    %v377 = vadd.f32 0.0, %v376
    %v378 = vpop.f32.mrf.mxu0
    %379 = vdwg.mxu0
    %vm380 = vcmp.gt.f32.partialorder %v103, 0.0
    %vm381 = vcmp.gt.f32.partialorder %v104, 0.0
    %v382 = vsel %vm380, 1, 0
    %v383 = vsel %vm381, 1, 0
    %vm384 = vcmp.eq.s32.totalorder %v382, 1
    %vm385 = vcmp.eq.s32.totalorder %v383, 1
    %v388 = vperm.slane %v364, 0
    %v389 = vlaneseq
    %v390 = vshrl.u32 %v389, 7
    %392 = vset.pattern.permute.xlu0 %v390
    %393 = vperm.xlu0 %392, %v388
    %v394 = vpop.permute.xlu0 %393
    %v395 = vperm.slane %v364, 1
    %v396 = vlaneseq
    %v397 = vshrl.u32 %v396, 7
    %399 = vset.pattern.permute.xlu0 %v397
    %400 = vperm.xlu0 %399, %v395
    %v401 = vpop.permute.xlu0 %400
    %v402 = vperm.slane %v364, 2
    %v403 = vlaneseq
    %v404 = vshrl.u32 %v403, 7
    %406 = vset.pattern.permute.xlu0 %v404
    %407 = vperm.xlu0 %406, %v402
    %v408 = vpop.permute.xlu0 %407
    %v409 = vperm.slane %v364, 3
    %v410 = vlaneseq
    %v411 = vshrl.u32 %v410, 7
    %413 = vset.pattern.permute.xlu0 %v411
    %414 = vperm.xlu0 %413, %v409
    %v415 = vpop.permute.xlu0 %414
    %v416 = vperm.slane %v364, 4
    %v417 = vlaneseq
    %v418 = vshrl.u32 %v417, 7
    %420 = vset.pattern.permute.xlu0 %v418
    %421 = vperm.xlu0 %420, %v416
    %v422 = vpop.permute.xlu0 %421
    %v423 = vperm.slane %v364, 5
    %v424 = vlaneseq
    %v425 = vshrl.u32 %v424, 7
    %427 = vset.pattern.permute.xlu0 %v425
    %428 = vperm.xlu0 %427, %v423
    %v429 = vpop.permute.xlu0 %428
    %v430 = vperm.slane %v364, 6
    %v431 = vlaneseq
    %v432 = vshrl.u32 %v431, 7
    %434 = vset.pattern.permute.xlu0 %v432
    %435 = vperm.xlu0 %434, %v430
    %v436 = vpop.permute.xlu0 %435
    %v437 = vperm.slane %v364, 7
    %v438 = vlaneseq
    %v439 = vshrl.u32 %v438, 7
    %441 = vset.pattern.permute.xlu0 %v439
    %442 = vperm.xlu0 %441, %v437
    %v443 = vpop.permute.xlu0 %442
    %v444 = vperm.slane %v377, 0
    %v445 = vlaneseq
    %v446 = vshrl.u32 %v445, 7
    %448 = vset.pattern.permute.xlu0 %v446
    %449 = vperm.xlu0 %448, %v444
    %v450 = vpop.permute.xlu0 %449
    %v451 = vperm.slane %v377, 1
    %v452 = vlaneseq
    %v453 = vshrl.u32 %v452, 7
    %455 = vset.pattern.permute.xlu0 %v453
    %456 = vperm.xlu0 %455, %v451
    %v457 = vpop.permute.xlu0 %456
    %v458 = vperm.slane %v377, 2
    %v459 = vlaneseq
    %v460 = vshrl.u32 %v459, 7
    %462 = vset.pattern.permute.xlu0 %v460
    %463 = vperm.xlu0 %462, %v458
    %v464 = vpop.permute.xlu0 %463
    %v465 = vperm.slane %v377, 3
    %v466 = vlaneseq
    %v467 = vshrl.u32 %v466, 7
    %469 = vset.pattern.permute.xlu0 %v467
    %470 = vperm.xlu0 %469, %v465
    %v471 = vpop.permute.xlu0 %470
    %v472 = vperm.slane %v377, 4
    %v473 = vlaneseq
    %v474 = vshrl.u32 %v473, 7
    %476 = vset.pattern.permute.xlu0 %v474
    %477 = vperm.xlu0 %476, %v472
    %v478 = vpop.permute.xlu0 %477
    %v479 = vperm.slane %v377, 5
    %v480 = vlaneseq
    %v481 = vshrl.u32 %v480, 7
    %483 = vset.pattern.permute.xlu0 %v481
    %484 = vperm.xlu0 %483, %v479
    %v485 = vpop.permute.xlu0 %484
    %v486 = vperm.slane %v377, 6
    %v487 = vlaneseq
    %v488 = vshrl.u32 %v487, 7
    %490 = vset.pattern.permute.xlu0 %v488
    %491 = vperm.xlu0 %490, %v486
    %v492 = vpop.permute.xlu0 %491
    %v493 = vperm.slane %v377, 7
    %v494 = vlaneseq
    %v495 = vshrl.u32 %v494, 7
    %497 = vset.pattern.permute.xlu0 %v495
    %498 = vperm.xlu0 %497, %v493
    %v499 = vpop.permute.xlu0 %498
    %v516 = vsel %vm384, %v394, -1e+09
    %v517 = vsel %vm384, %v401, -1e+09
    %v518 = vsel %vm384, %v408, -1e+09
    %v519 = vsel %vm384, %v415, -1e+09
    %v520 = vsel %vm384, %v422, -1e+09
    %v521 = vsel %vm384, %v429, -1e+09
    %v522 = vsel %vm384, %v436, -1e+09
    %v523 = vsel %vm384, %v443, -1e+09
    %v524 = vsel %vm385, %v450, -1e+09
    %v525 = vsel %vm385, %v457, -1e+09
    %v526 = vsel %vm385, %v464, -1e+09
    %v527 = vsel %vm385, %v471, -1e+09
    %v528 = vsel %vm385, %v478, -1e+09
    %v529 = vsel %vm385, %v485, -1e+09
    %v530 = vsel %vm385, %v492, -1e+09
    %v531 = vsel %vm385, %v499, -1e+09
    %548 = vset.pattern.permute.xlu0 0
    %549 = vperm.xlu0 %548, %v516
    %v550 = vpop.permute.xlu0 %549
    %551 = vset.pattern.permute.xlu0 0
    %552 = vperm.xlu0 %551, %v517
    %v553 = vpop.permute.xlu0 %552
    %554 = vset.pattern.permute.xlu0 0
    %555 = vperm.xlu0 %554, %v518
    %v556 = vpop.permute.xlu0 %555
    %557 = vset.pattern.permute.xlu0 0
    %558 = vperm.xlu0 %557, %v519
    %v559 = vpop.permute.xlu0 %558
    %560 = vset.pattern.permute.xlu0 0
    %561 = vperm.xlu0 %560, %v520
    %v562 = vpop.permute.xlu0 %561
    %563 = vset.pattern.permute.xlu0 0
    %564 = vperm.xlu0 %563, %v521
    %v565 = vpop.permute.xlu0 %564
    %566 = vset.pattern.permute.xlu0 0
    %567 = vperm.xlu0 %566, %v522
    %v568 = vpop.permute.xlu0 %567
    %569 = vset.pattern.permute.xlu0 0
    %570 = vperm.xlu0 %569, %v523
    %v571 = vpop.permute.xlu0 %570
    %572 = vset.pattern.permute.xlu0 0
    %573 = vperm.xlu0 %572, %v524
    %v574 = vpop.permute.xlu0 %573
    %575 = vset.pattern.permute.xlu0 0
    %576 = vperm.xlu0 %575, %v525
    %v577 = vpop.permute.xlu0 %576
    %578 = vset.pattern.permute.xlu0 0
    %579 = vperm.xlu0 %578, %v526
    %v580 = vpop.permute.xlu0 %579
    %581 = vset.pattern.permute.xlu0 0
    %582 = vperm.xlu0 %581, %v527
    %v583 = vpop.permute.xlu0 %582
    %584 = vset.pattern.permute.xlu0 0
    %585 = vperm.xlu0 %584, %v528
    %v586 = vpop.permute.xlu0 %585
    %587 = vset.pattern.permute.xlu0 0
    %588 = vperm.xlu0 %587, %v529
    %v589 = vpop.permute.xlu0 %588
    %590 = vset.pattern.permute.xlu0 0
    %591 = vperm.xlu0 %590, %v530
    %v592 = vpop.permute.xlu0 %591
    %593 = vset.pattern.permute.xlu0 0
    %594 = vperm.xlu0 %593, %v531
    %v595 = vpop.permute.xlu0 %594
    %v596 = vlaneseq
    %v597 = vand.u32 %v596, 127
    %v598 = vperm.slane %v550, %v597
    %v599 = vperm.slane %v553, %v597
    %v600 = vperm.slane %v556, %v597
    %v601 = vperm.slane %v559, %v597
    %v602 = vperm.slane %v562, %v597
    %v603 = vperm.slane %v565, %v597
    %v604 = vperm.slane %v568, %v597
    %v605 = vperm.slane %v571, %v597
    %v606 = vperm.slane %v574, %v597
    %v607 = vperm.slane %v577, %v597
    %v608 = vperm.slane %v580, %v597
    %v609 = vperm.slane %v583, %v597
    %v610 = vperm.slane %v586, %v597
    %v611 = vperm.slane %v589, %v597
    %v612 = vperm.slane %v592, %v597
    %v613 = vperm.slane %v595, %v597
    %vm614 = vcmask 1041409
    %v615 = vsel %vm614, %v599, %v598
    %vm616 = vcmask 1042434
    %v617 = vsel %vm616, %v600, %v615
    %vm618 = vcmask 1043459
    %v619 = vsel %vm618, %v601, %v617
    %vm620 = vcmask 1044484
    %v621 = vsel %vm620, %v602, %v619
    %vm622 = vcmask 1045509
    %v623 = vsel %vm622, %v603, %v621
    %vm624 = vcmask 1046534
    %v625 = vsel %vm624, %v604, %v623
    %vm626 = vcmask 1047559
    %v627 = vsel %vm626, %v605, %v625
    %v628 = vsel %vm614, %v607, %v606
    %v629 = vsel %vm616, %v608, %v628
    %v630 = vsel %vm618, %v609, %v629
    %v631 = vsel %vm620, %v610, %v630
    %v632 = vsel %vm622, %v611, %v631
    %v633 = vsel %vm624, %v612, %v632
    %v634 = vsel %vm626, %v613, %v633
    %vm637 = vcmask 64512
    %v638 = vsel %vm637, %v627, -inf
    %639 = vmax.xlane.f32.xlu0 %v638
    %v640 = vpop.xlane.xlu0 %639
    %v641 = vsel %vm637, %v634, -inf
    %642 = vmax.xlane.f32.xlu0 %v641
    %v643 = vpop.xlane.xlu0 %642
    %v646 = vperm.slane %v640, 0
    %v647 = vperm.slane %v640, 1
    %v648 = vperm.slane %v640, 2
    %v649 = vperm.slane %v640, 3
    %v650 = vperm.slane %v640, 4
    %v651 = vperm.slane %v640, 5
    %v652 = vperm.slane %v640, 6
    %v653 = vperm.slane %v640, 7
    %v654 = vperm.slane %v643, 0
    %v655 = vperm.slane %v643, 1
    %v656 = vperm.slane %v643, 2
    %v657 = vperm.slane %v643, 3
    %v658 = vperm.slane %v643, 4
    %v659 = vperm.slane %v643, 5
    %v660 = vperm.slane %v643, 6
    %v661 = vperm.slane %v643, 7
    %v678 = vsub.f32 %v516, %v646
    %v679 = vsub.f32 %v517, %v647
    %v680 = vsub.f32 %v518, %v648
    %v681 = vsub.f32 %v519, %v649
    %v682 = vsub.f32 %v520, %v650
    %v683 = vsub.f32 %v521, %v651
    %v684 = vsub.f32 %v522, %v652
    %v685 = vsub.f32 %v523, %v653
    %v686 = vsub.f32 %v524, %v654
    %v687 = vsub.f32 %v525, %v655
    %v688 = vsub.f32 %v526, %v656
    %v689 = vsub.f32 %v527, %v657
    %v690 = vsub.f32 %v528, %v658
    %v691 = vsub.f32 %v529, %v659
    %v692 = vsub.f32 %v530, %v660
    %v693 = vsub.f32 %v531, %v661
    %v694 = vmul.f32 %v678, 1.442695
    %v695 = vpow.pop %v694
    %v696 = vmul.f32 %v679, 1.442695
    %v697 = vpow.pop %v696
    %v698 = vmul.f32 %v680, 1.442695
    %v699 = vpow.pop %v698
    %v700 = vmul.f32 %v681, 1.442695
    %v701 = vpow.pop %v700
    %v702 = vmul.f32 %v682, 1.442695
    %v703 = vpow.pop %v702
    %v704 = vmul.f32 %v683, 1.442695
    %v705 = vpow.pop %v704
    %v706 = vmul.f32 %v684, 1.442695
    %v707 = vpow.pop %v706
    %v708 = vmul.f32 %v685, 1.442695
    %v709 = vpow.pop %v708
    %v710 = vmul.f32 %v686, 1.442695
    %v711 = vpow.pop %v710
    %v712 = vmul.f32 %v687, 1.442695
    %v713 = vpow.pop %v712
    %v714 = vmul.f32 %v688, 1.442695
    %v715 = vpow.pop %v714
    %v716 = vmul.f32 %v689, 1.442695
    %v717 = vpow.pop %v716
    %v718 = vmul.f32 %v690, 1.442695
    %v719 = vpow.pop %v718
    %v720 = vmul.f32 %v691, 1.442695
    %v721 = vpow.pop %v720
    %v722 = vmul.f32 %v692, 1.442695
    %v723 = vpow.pop %v722
    %v724 = vmul.f32 %v693, 1.442695
    %v725 = vpow.pop %v724
    %742 = vset.pattern.permute.xlu0 0
    %743 = vperm.xlu0 %742, %v695
    %v744 = vpop.permute.xlu0 %743
    %745 = vset.pattern.permute.xlu0 0
    %746 = vperm.xlu0 %745, %v697
    %v747 = vpop.permute.xlu0 %746
    %748 = vset.pattern.permute.xlu0 0
    %749 = vperm.xlu0 %748, %v699
    %v750 = vpop.permute.xlu0 %749
    %751 = vset.pattern.permute.xlu0 0
    %752 = vperm.xlu0 %751, %v701
    %v753 = vpop.permute.xlu0 %752
    %754 = vset.pattern.permute.xlu0 0
    %755 = vperm.xlu0 %754, %v703
    %v756 = vpop.permute.xlu0 %755
    %757 = vset.pattern.permute.xlu0 0
    %758 = vperm.xlu0 %757, %v705
    %v759 = vpop.permute.xlu0 %758
    %760 = vset.pattern.permute.xlu0 0
    %761 = vperm.xlu0 %760, %v707
    %v762 = vpop.permute.xlu0 %761
    %763 = vset.pattern.permute.xlu0 0
    %764 = vperm.xlu0 %763, %v709
    %v765 = vpop.permute.xlu0 %764
    %766 = vset.pattern.permute.xlu0 0
    %767 = vperm.xlu0 %766, %v711
    %v768 = vpop.permute.xlu0 %767
    %769 = vset.pattern.permute.xlu0 0
    %770 = vperm.xlu0 %769, %v713
    %v771 = vpop.permute.xlu0 %770
    %772 = vset.pattern.permute.xlu0 0
    %773 = vperm.xlu0 %772, %v715
    %v774 = vpop.permute.xlu0 %773
    %775 = vset.pattern.permute.xlu0 0
    %776 = vperm.xlu0 %775, %v717
    %v777 = vpop.permute.xlu0 %776
    %778 = vset.pattern.permute.xlu0 0
    %779 = vperm.xlu0 %778, %v719
    %v780 = vpop.permute.xlu0 %779
    %781 = vset.pattern.permute.xlu0 0
    %782 = vperm.xlu0 %781, %v721
    %v783 = vpop.permute.xlu0 %782
    %784 = vset.pattern.permute.xlu0 0
    %785 = vperm.xlu0 %784, %v723
    %v786 = vpop.permute.xlu0 %785
    %787 = vset.pattern.permute.xlu0 0
    %788 = vperm.xlu0 %787, %v725
    %v789 = vpop.permute.xlu0 %788
    %v790 = vperm.slane %v744, %v597
    %v791 = vperm.slane %v747, %v597
    %v792 = vperm.slane %v750, %v597
    %v793 = vperm.slane %v753, %v597
    %v794 = vperm.slane %v756, %v597
    %v795 = vperm.slane %v759, %v597
    %v796 = vperm.slane %v762, %v597
    %v797 = vperm.slane %v765, %v597
    %v798 = vperm.slane %v768, %v597
    %v799 = vperm.slane %v771, %v597
    %v800 = vperm.slane %v774, %v597
    %v801 = vperm.slane %v777, %v597
    %v802 = vperm.slane %v780, %v597
    %v803 = vperm.slane %v783, %v597
    %v804 = vperm.slane %v786, %v597
    %v805 = vperm.slane %v789, %v597
    %v806 = vsel %vm614, %v791, %v790
    %v807 = vsel %vm616, %v792, %v806
    %v808 = vsel %vm618, %v793, %v807
    %v809 = vsel %vm620, %v794, %v808
    %v810 = vsel %vm622, %v795, %v809
    %v811 = vsel %vm624, %v796, %v810
    %v812 = vsel %vm626, %v797, %v811
    %v813 = vsel %vm614, %v799, %v798
    %v814 = vsel %vm616, %v800, %v813
    %v815 = vsel %vm618, %v801, %v814
    %v816 = vsel %vm620, %v802, %v815
    %v817 = vsel %vm622, %v803, %v816
    %v818 = vsel %vm624, %v804, %v817
    %v819 = vsel %vm626, %v805, %v818
    %v822 = vsel %vm637, %v812, 0.0
    %823 = vadd.xlane.f32.xlu0 %v822
    %v824 = vpop.xlane.xlu0 %823
    %v825 = vsel %vm637, %v819, 0.0
    %826 = vadd.xlane.f32.xlu0 %v825
    %v827 = vpop.xlane.xlu0 %826
    %v828 = vrcp.pop %v824
    %v829 = vrcp.pop %v827
    %v832 = vperm.slane %v828, 0
    %v833 = vperm.slane %v828, 1
    %v834 = vperm.slane %v828, 2
    %v835 = vperm.slane %v828, 3
    %v836 = vperm.slane %v828, 4
    %v837 = vperm.slane %v828, 5
    %v838 = vperm.slane %v828, 6
    %v839 = vperm.slane %v828, 7
    %v840 = vperm.slane %v829, 0
    %v841 = vperm.slane %v829, 1
    %v842 = vperm.slane %v829, 2
    %v843 = vperm.slane %v829, 3
    %v844 = vperm.slane %v829, 4
    %v845 = vperm.slane %v829, 5
    %v846 = vperm.slane %v829, 6
    %v847 = vperm.slane %v829, 7
    %v864 = vmul.f32 %v695, %v832
    %v865 = vmul.f32 %v697, %v833
    %v866 = vmul.f32 %v699, %v834
    %v867 = vmul.f32 %v701, %v835
    %v868 = vmul.f32 %v703, %v836
    %v869 = vmul.f32 %v705, %v837
    %v870 = vmul.f32 %v707, %v838
    %v871 = vmul.f32 %v709, %v839
    %v872 = vmul.f32 %v711, %v840
    %v873 = vmul.f32 %v713, %v841
    %v874 = vmul.f32 %v715, %v842
    %v875 = vmul.f32 %v717, %v843
    %v876 = vmul.f32 %v719, %v844
    %v877 = vmul.f32 %v721, %v845
    %v878 = vmul.f32 %v723, %v846
    %v879 = vmul.f32 %v725, %v847
    %v880 = vpack.c.bf16 %v864, %v864
    %v881 = vpack.c.bf16 %v865, %v865
    %v882 = vpack.c.bf16 %v866, %v866
    %v883 = vpack.c.bf16 %v867, %v867
    %v884 = vpack.c.bf16 %v868, %v868
    %v885 = vpack.c.bf16 %v869, %v869
    %v886 = vpack.c.bf16 %v870, %v870
    %v887 = vpack.c.bf16 %v871, %v871
    %v888 = vpack.c.bf16 %v872, %v872
    %v889 = vpack.c.bf16 %v873, %v873
    %v890 = vpack.c.bf16 %v874, %v874
    %v891 = vpack.c.bf16 %v875, %v875
    %v892 = vpack.c.bf16 %v876, %v876
    %v893 = vpack.c.bf16 %v877, %v877
    %v894 = vpack.c.bf16 %v878, %v878
    %v895 = vpack.c.bf16 %v879, %v879
    %v904 = vunpack.c.l.b16 %v880
    %v905 = vunpack.c.l.b16 %v881
    %v906 = vunpack.c.l.b16 %v882
    %v907 = vunpack.c.l.b16 %v883
    %v908 = vunpack.c.l.b16 %v884
    %v909 = vunpack.c.l.b16 %v885
    %v910 = vunpack.c.l.b16 %v886
    %v911 = vunpack.c.l.b16 %v887
    %v912 = vpack.c.b16 %v904, %v904
    %v913 = vpack.c.b16 %v905, %v905
    %v914 = vpack.c.b16 %v906, %v906
    %v915 = vpack.c.b16 %v907, %v907
    %v916 = vpack.c.b16 %v908, %v908
    %v917 = vpack.c.b16 %v909, %v909
    %v918 = vpack.c.b16 %v910, %v910
    %v919 = vpack.c.b16 %v911, %v911
    %v920 = vunpack.c.l.b16 %v912
    %v921 = vunpack.c.l.b16 %v913
    %v922 = vunpack.c.l.b16 %v914
    %v923 = vunpack.c.l.b16 %v915
    %v924 = vunpack.c.l.b16 %v916
    %v925 = vunpack.c.l.b16 %v917
    %v926 = vunpack.c.l.b16 %v918
    %v927 = vunpack.c.l.b16 %v919
    %928 = vset.pattern.permute.xlu0 0
    %929 = vperm.xlu0 %928, %v920
    %v930 = vpop.permute.xlu0 %929
    %931 = vset.pattern.permute.xlu0 0
    %932 = vperm.xlu0 %931, %v921
    %v933 = vpop.permute.xlu0 %932
    %934 = vset.pattern.permute.xlu0 0
    %935 = vperm.xlu0 %934, %v922
    %v936 = vpop.permute.xlu0 %935
    %937 = vset.pattern.permute.xlu0 0
    %938 = vperm.xlu0 %937, %v923
    %v939 = vpop.permute.xlu0 %938
    %940 = vset.pattern.permute.xlu0 0
    %941 = vperm.xlu0 %940, %v924
    %v942 = vpop.permute.xlu0 %941
    %943 = vset.pattern.permute.xlu0 0
    %944 = vperm.xlu0 %943, %v925
    %v945 = vpop.permute.xlu0 %944
    %946 = vset.pattern.permute.xlu0 0
    %947 = vperm.xlu0 %946, %v926
    %v948 = vpop.permute.xlu0 %947
    %949 = vset.pattern.permute.xlu0 0
    %950 = vperm.xlu0 %949, %v927
    %v951 = vpop.permute.xlu0 %950
    %v952 = vperm.slane %v930, %v597
    %v953 = vperm.slane %v933, %v597
    %v954 = vperm.slane %v936, %v597
    %v955 = vperm.slane %v939, %v597
    %v956 = vperm.slane %v942, %v597
    %v957 = vperm.slane %v945, %v597
    %v958 = vperm.slane %v948, %v597
    %v959 = vperm.slane %v951, %v597
    %v960 = vsel %vm614, %v953, %v952
    %v961 = vsel %vm616, %v954, %v960
    %v962 = vsel %vm618, %v955, %v961
    %v963 = vsel %vm620, %v956, %v962
    %v964 = vsel %vm622, %v957, %v963
    %v965 = vsel %vm624, %v958, %v964
    %v966 = vsel %vm626, %v959, %v965
    %v967 = vpack.c.b16 %v966, %v966
    %v969 = vsel %vm637, %v967, 0
    %vm971 = vcmask 1043456
    %v973 = vsel %vm971, %v352, 0
    %975 = vmatpush.bf16.msra.mxu0 0
    %976 = vmatpush.bf16.msra.mxu0 0
    %977 = vmatpush.bf16.msra.mxu0 0
    %978 = vmatpush.bf16.msra.mxu0 0
    %979 = vmatpush.bf16.msra.mxu0 0
    %980 = vmatpush.bf16.msra.mxu0 0
    %981 = vmatpush.bf16.msra.mxu0 0
    %982 = vmatpush.bf16.msra.mxu0 %v973
    %983 = vmatmul.bf16.gmra.mxu0 %v969
    %v984 = vpop.f32.mrf.mxu0
    %v985 = vadd.f32 0.0, %v984
    %v986 = vpop.f32.mrf.mxu0
    %987 = vdwg.mxu0
    %v996 = vunpack.c.l.b16 %v888
    %v997 = vunpack.c.l.b16 %v889
    %v998 = vunpack.c.l.b16 %v890
    %v999 = vunpack.c.l.b16 %v891
    %v1000 = vunpack.c.l.b16 %v892
    %v1001 = vunpack.c.l.b16 %v893
    %v1002 = vunpack.c.l.b16 %v894
    %v1003 = vunpack.c.l.b16 %v895
    %v1004 = vpack.c.b16 %v996, %v996
    %v1005 = vpack.c.b16 %v997, %v997
    %v1006 = vpack.c.b16 %v998, %v998
    %v1007 = vpack.c.b16 %v999, %v999
    %v1008 = vpack.c.b16 %v1000, %v1000
    %v1009 = vpack.c.b16 %v1001, %v1001
    %v1010 = vpack.c.b16 %v1002, %v1002
    %v1011 = vpack.c.b16 %v1003, %v1003
    %v1012 = vunpack.c.l.b16 %v1004
    %v1013 = vunpack.c.l.b16 %v1005
    %v1014 = vunpack.c.l.b16 %v1006
    %v1015 = vunpack.c.l.b16 %v1007
    %v1016 = vunpack.c.l.b16 %v1008
    %v1017 = vunpack.c.l.b16 %v1009
    %v1018 = vunpack.c.l.b16 %v1010
    %v1019 = vunpack.c.l.b16 %v1011
    %1020 = vset.pattern.permute.xlu0 0
    %1021 = vperm.xlu0 %1020, %v1012
    %v1022 = vpop.permute.xlu0 %1021
    %1023 = vset.pattern.permute.xlu0 0
    %1024 = vperm.xlu0 %1023, %v1013
    %v1025 = vpop.permute.xlu0 %1024
    %1026 = vset.pattern.permute.xlu0 0
    %1027 = vperm.xlu0 %1026, %v1014
    %v1028 = vpop.permute.xlu0 %1027
    %1029 = vset.pattern.permute.xlu0 0
    %1030 = vperm.xlu0 %1029, %v1015
    %v1031 = vpop.permute.xlu0 %1030
    %1032 = vset.pattern.permute.xlu0 0
    %1033 = vperm.xlu0 %1032, %v1016
    %v1034 = vpop.permute.xlu0 %1033
    %1035 = vset.pattern.permute.xlu0 0
    %1036 = vperm.xlu0 %1035, %v1017
    %v1037 = vpop.permute.xlu0 %1036
    %1038 = vset.pattern.permute.xlu0 0
    %1039 = vperm.xlu0 %1038, %v1018
    %v1040 = vpop.permute.xlu0 %1039
    %1041 = vset.pattern.permute.xlu0 0
    %1042 = vperm.xlu0 %1041, %v1019
    %v1043 = vpop.permute.xlu0 %1042
    %v1044 = vperm.slane %v1022, %v597
    %v1045 = vperm.slane %v1025, %v597
    %v1046 = vperm.slane %v1028, %v597
    %v1047 = vperm.slane %v1031, %v597
    %v1048 = vperm.slane %v1034, %v597
    %v1049 = vperm.slane %v1037, %v597
    %v1050 = vperm.slane %v1040, %v597
    %v1051 = vperm.slane %v1043, %v597
    %v1052 = vsel %vm614, %v1045, %v1044
    %v1053 = vsel %vm616, %v1046, %v1052
    %v1054 = vsel %vm618, %v1047, %v1053
    %v1055 = vsel %vm620, %v1048, %v1054
    %v1056 = vsel %vm622, %v1049, %v1055
    %v1057 = vsel %vm624, %v1050, %v1056
    %v1058 = vsel %vm626, %v1051, %v1057
    %v1059 = vpack.c.b16 %v1058, %v1058
    %v1061 = vsel %vm637, %v1059, 0
    %v1064 = vsel %vm971, %v353, 0
    %1066 = vmatpush.bf16.msra.mxu0 0
    %1067 = vmatpush.bf16.msra.mxu0 0
    %1068 = vmatpush.bf16.msra.mxu0 0
    %1069 = vmatpush.bf16.msra.mxu0 0
    %1070 = vmatpush.bf16.msra.mxu0 0
    %1071 = vmatpush.bf16.msra.mxu0 0
    %1072 = vmatpush.bf16.msra.mxu0 0
    %1073 = vmatpush.bf16.msra.mxu0 %v1064
    %1074 = vmatmul.bf16.gmra.mxu0 %v1061
    %v1075 = vpop.f32.mrf.mxu0
    %v1076 = vadd.f32 0.0, %v1075
    %v1077 = vpop.f32.mrf.mxu0
    %1078 = vdwg.mxu0
    %v1079 = vpack.c.bf16 %v1076, %v985
    %v1080 = vld [vmem:[#allocation8] sm:$0xf]
    %v1081 = vld [vmem:[#allocation8 + $0x4] sm:$0xf]
    %v1082 = vld [vmem:[#allocation8 + $0x8] sm:$0xf]
    %v1083 = vld [vmem:[#allocation8 + $0xc] sm:$0xf]
    %v1084 = vld [vmem:[#allocation8 + $0x10] sm:$0xf]
    %v1085 = vld [vmem:[#allocation8 + $0x14] sm:$0xf]
    %v1086 = vld [vmem:[#allocation8 + $0x18] sm:$0xf]
    %v1087 = vld [vmem:[#allocation8 + $0x1c] sm:$0xf]
    %v1088 = vld [vmem:[#allocation8 + $0x20] sm:$0xf]
    %v1089 = vld [vmem:[#allocation8 + $0x24] sm:$0xf]
    %v1090 = vld [vmem:[#allocation8 + $0x28] sm:$0xf]
    %v1091 = vld [vmem:[#allocation8 + $0x2c] sm:$0xf]
    %v1092 = vld [vmem:[#allocation8 + $0x30] sm:$0xf]
    %v1093 = vld [vmem:[#allocation8 + $0x34] sm:$0xf]
    %v1094 = vld [vmem:[#allocation8 + $0x38] sm:$0xf]
    %v1095 = vld [vmem:[#allocation8 + $0x3c] sm:$0xf]
    %v1112 = vunpack.c.l.b16 %v1080
    %v1113 = vunpack.c.l.b16 %v1081
    %v1114 = vunpack.c.l.b16 %v1082
    %v1115 = vunpack.c.l.b16 %v1083
    %v1116 = vunpack.c.l.b16 %v1084
    %v1117 = vunpack.c.l.b16 %v1085
    %v1118 = vunpack.c.l.b16 %v1086
    %v1119 = vunpack.c.l.b16 %v1087
    %v1120 = vunpack.c.l.b16 %v1088
    %v1121 = vunpack.c.l.b16 %v1089
    %v1122 = vunpack.c.l.b16 %v1090
    %v1123 = vunpack.c.l.b16 %v1091
    %v1124 = vunpack.c.l.b16 %v1092
    %v1125 = vunpack.c.l.b16 %v1093
    %v1126 = vunpack.c.l.b16 %v1094
    %v1127 = vunpack.c.l.b16 %v1095
    %v1128 = vpack.c.b16 %v1113, %v1112
    %v1129 = vpack.c.b16 %v1115, %v1114
    %v1130 = vpack.c.b16 %v1117, %v1116
    %v1131 = vpack.c.b16 %v1119, %v1118
    %v1132 = vpack.c.b16 %v1121, %v1120
    %v1133 = vpack.c.b16 %v1123, %v1122
    %v1134 = vpack.c.b16 %v1125, %v1124
    %v1135 = vpack.c.b16 %v1127, %v1126
    %1144 = vmatpush.bf16.msra.mxu0 %v1135
    %1145 = vmatpush.bf16.msra.mxu0 %v1134
    %1146 = vmatpush.bf16.msra.mxu0 %v1133
    %1147 = vmatpush.bf16.msra.mxu0 %v1132
    %1148 = vmatpush.bf16.msra.mxu0 %v1131
    %1149 = vmatpush.bf16.msra.mxu0 %v1130
    %1150 = vmatpush.bf16.msra.mxu0 %v1129
    %1151 = vmatpush.bf16.msra.mxu0 %v1128
    %1152 = vmatmul.bf16.gmra.mxu0 %v1079
    %v1153 = vpop.f32.mrf.mxu0
    %v1154 = vadd.f32 %v139, %v1153
    %v1155 = vpop.f32.mrf.mxu0
    %v1156 = vadd.f32 %v141, %v1155
    %1157 = vdwg.mxu0
    %1158 = vst [vmem:[#allocation10] sm:$0xff] %v1154
    %1159 = vst [vmem:[#allocation10 + $0x8] sm:$0xff] %v1156
    %v1162 = vperm.slane %v103, %v597
    %v1163 = vperm.slane %v104, %v597
    %v1164 = vsel %vm614, %v1163, %v1162
    %vm1166 = vcmask 58368
    %1167 = vst.msk [vmem:[#allocation11] sm:$0x3] %vm1166, %v1164
    // Predicated region
    $region38: #{tpu_custom_call.1} parent=1 // pred_check
      _
    $region39: #{tpu_custom_call.1} parent=1 // pred_check_branch
      %1169 = sbr.rel (0) target = $region41
    $region40: #{tpu_custom_call.1} parent=1 // pred_region
      %1171 = vsyncadd [#allocation4], 0
      %s1172 = sshll.u32 [#allocation10], 4
      %s1173 = int_to_ptr.vmem [resolvable:$true] %s1172
      %s1174 = sshll.u32 %s5, 4
      %s1175 = int_to_ptr.hbm [resolvable:$true] %s1174
      %1180 = dma.vmem_to_hbm [thread:$0]  %s1173, 256, %s1175, [#allocation4], 128, 128, 8
    $region41: #{tpu_custom_call.1} parent=1 // pred_fallthru
      _
    // Predicated region
    $region42: #{tpu_custom_call.1} parent=1 // pred_check
      _
    $region43: #{tpu_custom_call.1} parent=1 // pred_check_branch
      %1182 = sbr.rel (0) target = $region45
    $region44: #{tpu_custom_call.1} parent=1 // pred_region
      %1184 = vsyncadd [#allocation12], 0
      %s1186 = sshll.u32 [#allocation11], 4
      %s1187 = int_to_ptr.vmem [resolvable:$true] %s1186
      %s1188 = sshll.u32 %s6, 4
      %s1189 = int_to_ptr.hbm [resolvable:$true] %s1188
      %1191 = dma.vmem_to_hbm [thread:$0]  %s1187, 32, %s1189, [#allocation12]
    $region45: #{tpu_custom_call.1} parent=1 // pred_fallthru
      _
    // Predicated region
    $region46: #{tpu_custom_call.1} parent=1 // pred_check
      _
    $region47: #{tpu_custom_call.1} parent=1 // pred_check_branch
      %1193 = sbr.rel (0) target = $region49
    $region48: #{tpu_custom_call.1} parent=1 // pred_region
      %1195 = dma.done [#allocation4], 256
    $region49: #{tpu_custom_call.1} parent=1 // pred_fallthru
      _
    // Predicated region
    $region50: #{tpu_custom_call.1} parent=1 // pred_check
      _
    $region51: #{tpu_custom_call.1} parent=1 // pred_check_branch
      %1197 = sbr.rel (0) target = $region53
    $region52: #{tpu_custom_call.1} parent=1 // pred_region
      %1199 = dma.done [#allocation12], 32
    $region53: #{tpu_custom_call.1} parent=1 // pred_fallthru
      _
    %1200 = vsyncpa [#allocation3], 1
    %1201 = vsyncpa [#allocation6], 1
    %1202 = vsyncpa [#allocation9], 1
    %1203 = vsyncpa [#allocation4], 1
    %1204 = vsyncpa [#allocation12], 1

</llo_original>
